<compile_context>
chip_gen: v7x
topology: tpu7x:2x2x1
jax: 0.10.0
libtpu: 0.0.40
codegen_flags: <defaults>
</compile_context>

<pallas_src>
import jax
import jax.numpy as jnp
from jax.experimental import pallas as pl
from jax.experimental.pallas import tpu as pltpu

_SMOOTH = 1e-5


def _dice_partials_kernel(score_ref, tgt_ref, out_ref):
    """One (batch, h-tile, class) grid step: per-lane partial reductions."""
    c = pl.program_id(2)                                   # class index (innermost)
    s = score_ref[...].astype(jnp.float32)                 # (Ht, W) scores for class c
    t = (tgt_ref[...] == c).astype(jnp.float32)            # (Ht, W) one-hot plane

    # Sublane-only reductions; the tiny cross-lane fold happens in the wrapper.
    inter = jnp.sum(s * t, axis=0, keepdims=True)          # (1, W)
    y_sum = jnp.sum(t, axis=0, keepdims=True)              # t*t == t for a {0,1} mask
    z_sum = jnp.sum(s * s, axis=0, keepdims=True)          # (1, W)

    out_ref[...] = jnp.concatenate([inter, y_sum, z_sum], axis=0)   # (3, W)


def _pick_h_tile(H, W, itemsize, target_bytes=1 << 20):
    """Largest divisor of H that is a multiple of 8 (or H itself) keeping one
    score tile <= ~target_bytes (bounded VMEM on v5e/v6e/v7x)."""
    max_rows = max(1, target_bytes // max(1, W * itemsize))
    if H <= max_rows:
        return H
    for ht in range(min(H, max_rows), 0, -1):
        if H % ht == 0 and (ht % 8 == 0 or ht == H):
            return ht
    # TODO(synk): mask-based ragged-H tiling for H with no suitable divisor.
    return H


def dice_loss(inputs, target, n_classes, weight=None, softmax=False):
    """Pallas implementation of DiceLoss.forward (returns the scalar loss)."""
    if softmax:
        inputs = jax.nn.softmax(inputs, axis=1)   # glue; matches torch.softmax(dim=1)

    B, C, H, W = inputs.shape
    assert C == n_classes, f"predict C={C} & n_classes={n_classes} mismatch"
    assert target.shape == (B, H, W), (target.shape, (B, H, W))

    tgt = target.astype(jnp.int32)
    Ht = _pick_h_tile(H, W, jnp.dtype(inputs.dtype).itemsize)
    nh = H // Ht

    partials = pl.pallas_call(
        _dice_partials_kernel,
        out_shape=jax.ShapeDtypeStruct((B, nh, C, 3, W), jnp.float32),
        grid=(B, nh, C),                                    # class innermost
        in_specs=[
            # score (B, C, H, W): one (Ht, W) class plane per step, native dtype.
            pl.BlockSpec((None, None, Ht, W), lambda b, p, c: (b, c, p, 0)),
            # target (B, H, W): index_map ignores c -> block stays resident while
            # the inner class loop runs (fetched once per pixel tile).
            pl.BlockSpec((None, Ht, W), lambda b, p, c: (b, p, 0)),
        ],
        out_specs=pl.BlockSpec((None, None, None, 3, W),
                               lambda b, p, c: (b, p, c, 0, 0)),
        compiler_params=pltpu.CompilerParams(
            dimension_semantics=("parallel", "parallel", "arbitrary")),
    )(inputs, tgt)

    # Tiny O(C) epilogue in plain JAX: fold batch/tiles/lanes, weighted dice.
    sums = jnp.sum(partials, axis=(0, 1, 4))                # (C, 3)
    intersect, y_sum, z_sum = sums[:, 0], sums[:, 1], sums[:, 2]
    dice = 1.0 - (2.0 * intersect + _SMOOTH) / (z_sum + y_sum + _SMOOTH)

    if weight is None:
        w = jnp.ones((n_classes,), jnp.float32)
    else:
        w = jnp.asarray(weight, dtype=jnp.float32)
    return jnp.sum(dice * w) / n_classes


def _ref_dice_loss(inputs, target, n_classes, weight=None, softmax=False):
    """Pure-JAX reference mirroring the PyTorch module."""
    if softmax:
        inputs = jax.nn.softmax(inputs, axis=1)
    tgt_1h = jax.nn.one_hot(target, n_classes, axis=1, dtype=jnp.float32)
    if weight is None:
        weight = [1.0] * n_classes
    smooth = 1e-5
    loss = 0.0
    for i in range(n_classes):
        s = inputs[:, i].astype(jnp.float32)
        t = tgt_1h[:, i]
        inter = jnp.sum(s * t)
        y_sum = jnp.sum(t * t)
        z_sum = jnp.sum(s * s)
        d = 1.0 - (2.0 * inter + smooth) / (z_sum + y_sum + smooth)
        loss = loss + d * weight[i]
    return loss / n_classes


if __name__ == "__main__":
    B, C, H, W = 2, 4, 16, 16
    key = jax.random.PRNGKey(0)
    k_in, k_tgt = jax.random.split(key)

    inputs = jax.random.uniform(k_in, (B, C, H, W), dtype=jnp.float32)
    target = jax.random.randint(k_tgt, (B, H, W), 0, C, dtype=jnp.int32)

    # Default path (softmax=False, uniform weights), like the module default.
    out = jax.block_until_ready(dice_loss(inputs, target, n_classes=C))
    ref = _ref_dice_loss(inputs, target, n_classes=C)
    assert jnp.allclose(out, ref, atol=1e-5, rtol=1e-5), (out, ref)

    # Exercise softmax + explicit class weights (wrapper glue paths).
    wts = [0.5, 1.0, 1.5, 2.0]
    out2 = jax.block_until_ready(
        dice_loss(inputs, target, n_classes=C, weight=wts, softmax=True))
    ref2 = _ref_dice_loss(inputs, target, n_classes=C, weight=wts, softmax=True)
    assert jnp.allclose(out2, ref2, atol=1e-5, rtol=1e-5), (out2, ref2)

    print("KERNEL_OK")
</pallas_src>

<mosaic_0001>
module attributes {stable_mosaic.version = 11 : i64} {
  func.func @_dice_partials_kernel(%arg0: i32, %arg1: i32, %arg2: i32, %arg3: memref<1x1x16x16xf32, #tpu.memory_space<vmem>>, %arg4: memref<1x16x16xi32, #tpu.memory_space<vmem>>, %arg5: memref<1x1x1x3x16xf32, #tpu.memory_space<vmem>>) attributes {dimension_semantics = [#tpu.dimension_semantics<parallel>, #tpu.dimension_semantics<parallel>, #tpu.dimension_semantics<arbitrary>], iteration_bounds = array<i64: 2, 1, 4>, scalar_prefetch = 0 : i64, scratch_operands = 0 : i64, tpu.core_type = #tpu.core_type<tc>, window_params = [{transform_indices = @transform_0, window_bounds = array<i64: 1, 1, 16, 16>}, {transform_indices = @transform_1, window_bounds = array<i64: 1, 16, 16>}, {transform_indices = @transform_2, window_bounds = array<i64: 1, 1, 1, 3, 16>}]} {
    %c0 = arith.constant 0 : index
    %c0_0 = arith.constant 0 : index
    %c0_1 = arith.constant 0 : index
    %c0_2 = arith.constant 0 : index
    %0 = vector.load %arg3[%c0, %c0_0, %c0_1, %c0_2] : memref<1x1x16x16xf32, #tpu.memory_space<vmem>>, vector<1x1x16x16xf32>
    %1 = vector.shape_cast %0 : vector<1x1x16x16xf32> to vector<16x16xf32>
    %c0_3 = arith.constant 0 : index
    %c0_4 = arith.constant 0 : index
    %c0_5 = arith.constant 0 : index
    %2 = vector.load %arg4[%c0_3, %c0_4, %c0_5] : memref<1x16x16xi32, #tpu.memory_space<vmem>>, vector<1x16x16xi32>
    %3 = vector.shape_cast %2 : vector<1x16x16xi32> to vector<16x16xi32>
    %4 = vector.broadcast %arg2 : i32 to vector<16x16xi32>
    %5 = arith.cmpi eq, %3, %4 : vector<16x16xi32>
    %6 = arith.extui %5 : vector<16x16xi1> to vector<16x16xi32>
    %7 = arith.sitofp %6 : vector<16x16xi32> to vector<16x16xf32>
    %8 = arith.mulf %1, %7 : vector<16x16xf32>
    %cst = arith.constant dense<0.000000e+00> : vector<16xf32>
    %9 = vector.multi_reduction <add>, %8, %cst [0] : vector<16x16xf32> to vector<16xf32>
    %10 = vector.shape_cast %9 : vector<16xf32> to vector<1x16xf32>
    %cst_6 = arith.constant dense<0.000000e+00> : vector<16xf32>
    %11 = vector.multi_reduction <add>, %7, %cst_6 [0] : vector<16x16xf32> to vector<16xf32>
    %12 = vector.shape_cast %11 : vector<16xf32> to vector<1x16xf32>
    %13 = arith.mulf %1, %1 : vector<16x16xf32>
    %cst_7 = arith.constant dense<0.000000e+00> : vector<16xf32>
    %14 = vector.multi_reduction <add>, %13, %cst_7 [0] : vector<16x16xf32> to vector<16xf32>
    %15 = vector.shape_cast %14 : vector<16xf32> to vector<1x16xf32>
    %16 = tpu.concatenate %10, %12, %15 in 0 : vector<1x16xf32>, vector<1x16xf32>, vector<1x16xf32> -> vector<3x16xf32>
    %c0_8 = arith.constant 0 : index
    %c0_9 = arith.constant 0 : index
    %c0_10 = arith.constant 0 : index
    %c0_11 = arith.constant 0 : index
    %c0_12 = arith.constant 0 : index
    %17 = vector.load %arg5[%c0_8, %c0_9, %c0_10, %c0_11, %c0_12] : memref<1x1x1x3x16xf32, #tpu.memory_space<vmem>>, vector<1x1x1x3x16xf32>
    %18 = vector.shape_cast %17 : vector<1x1x1x3x16xf32> to vector<3x16xf32>
    %19 = vector.shape_cast %16 : vector<3x16xf32> to vector<1x1x1x3x16xf32>
    tpu.vector_store %arg5[%c0_8, %c0_9, %c0_10, %c0_11, %c0_12], %19 {strides = array<i32>} : memref<1x1x1x3x16xf32, #tpu.memory_space<vmem>>, vector<1x1x1x3x16xf32>,
    return
  }
  func.func @transform_0(%arg0: i32, %arg1: i32, %arg2: i32) -> (i32, i32, i32, i32) {
    %c0_i32 = arith.constant 0 : i32
    %c0_i32_0 = arith.constant 0 : i32
    return %arg0, %arg2, %arg1, %c0_i32 : i32, i32, i32, i32
  }
  func.func @transform_1(%arg0: i32, %arg1: i32, %arg2: i32) -> (i32, i32, i32) {
    %c0_i32 = arith.constant 0 : i32
    %c0_i32_0 = arith.constant 0 : i32
    return %arg0, %arg1, %c0_i32 : i32, i32, i32
  }
  func.func @transform_2(%arg0: i32, %arg1: i32, %arg2: i32) -> (i32, i32, i32, i32, i32) {
    %c0_i32 = arith.constant 0 : i32
    %c0_i32_0 = arith.constant 0 : i32
    %c0_i32_1 = arith.constant 0 : i32
    return %arg0, %arg1, %arg2, %c0_i32, %c0_i32_0 : i32, i32, i32, i32, i32
  }
}

</mosaic_0001>

<llo_original>
// kernel: tpu_custom_call.1
$region0: #{tpu_custom_call.1}
  #allocation0 [shape = 'u32[]', space=smem, size = 0x4, offset = 0x4, fixed_abs, tag = 'smem constant byte address 0x4 - core index']
  #allocation1 [shape = 'u32[144,128]{1,0:T(1,128)}', space=vmem, size = 0x12000, scoped, tag = 'internal scratch']
  %s0 = inlined_call_operand.hbm [shape: f32[2,4,16,16], index: 0, kind: input, shape index: {}]
  %s1 = inlined_call_operand.hbm [shape: s32[2,16,16], index: 1, kind: input, shape index: {}]
  %s2 = inlined_call_operand.vmem [shape: f32[2,1,4,3,16], index: 2, kind: output, shape index: {}]
  %s3 = sld [smem:[#allocation0]]
  $region49: #{tpu_custom_call.1} parent=0
    _
  %s5 = ssub.s32 1, %s3
  %s6 = scalar_select 0, %s5, %s3
  $region1: #{tpu_custom_call.1} parent=0
    #allocation2 [shape = 'u8[16384]{0}', space=vmem, size = 0x4000, scoped, tag = 'input window, operand 0']
    #allocation3 [shape = 's32[2]{0}', space=sflag, size = 0x8, scoped, tag = 'scoped memory for tpu_custom_call.1']
    #allocation4 [shape = 'u8[16384]{0}', space=vmem, size = 0x4000, scoped, tag = 'input window, operand 1']
    #allocation5 [shape = 's32[2]{0}', space=sflag, size = 0x8, scoped, tag = 'scoped memory for tpu_custom_call.1']
    %7 = vsyncpa [#allocation3], 0
    %s8 = scalar_lea.sflag [#allocation3], 1
    %9 = vsyncpa %s8, 0
    %10 = vsyncpa [#allocation5], 0
    %s11 = scalar_lea.sflag [#allocation5], 1
    %12 = vsyncpa %s11, 0
    loop: start=0, step=1, limit=10
    $region2: #{tpu_custom_call.1} parent=1 // loop_pre_header
      _
    $region3: #{tpu_custom_call.1} parent=1 // loop_header
      %s14 = sphi 0, %s18
      %p15 = scmp.ge.s32.totalorder %s14, 10
      %s21 = sphi 0, %s40
      %s22 = sphi 0, %s36
      %s23 = sphi 0, %s32
      %s24 = sphi 0, %s21
      %s25 = sphi 0, %s22
      %s26 = sphi 0, %s23
      %s27 = sphi 0, %s24
      %s28 = sphi 0, %s25
      %s29 = sphi 0, %s26
      %s47 = sphi 0, %s49
      %s50 = sphi 0, %s47
      %s51 = sphi 0, %s50
      %s67 = sphi 0, %s51
      %s75 = sphi 0, %s77
      %s78 = sphi 0, %s75
      %s79 = sphi 0, %s78
      %s95 = sphi 0, %s79
      %s105 = sphi 0, %s107
      %s108 = sphi 0, %s105
      %s109 = sphi 0, %s108
      %s125 = sphi 0, %s109
    $region4: #{tpu_custom_call.1} parent=1 // loop_header_branch
      %17 = sbr.rel (%p15) target = $region8
    $region5: #{tpu_custom_call.1} parent=1 // loop_body
      %s19 = ssub.s32 %s14, 1
      %s20 = ssub.s32 %s14, 2
      %s30 = sadd.s32 1, %s23
      %p31 = scmp.ge.s32.totalorder %s30, 4
      %s32 = scalar_select %p31, 0, %s30
      %s33 = sadd.s32 1, %s22
      %s34 = scalar_select %p31, %s33, %s22
      %p35 = scmp.ge.s32.totalorder %s34, 1
      %s36 = scalar_select %p35, 0, %s34
      %s37 = sadd.s32 1, %s21
      %s38 = scalar_select %p35, %s37, %s21
      %p39 = scmp.ge.s32.totalorder %s38, 2
      %s40 = scalar_select %p39, 0, %s38
      %s41 = ssub.s32 %s21, %s40
      %s42 = ssub.s32 %s23, %s32
      %s43 = sor.u32 %s41, %s42
      %s44 = ssub.s32 %s22, %s36
      %s45 = sor.u32 %s43, %s44
      %p46 = scmp.eq.s32.totalorder %s45, 0
      %s48 = sadd.s32 %s47, 1
      %s49 = scalar_select %p46, %s47, %s48
      %p52 = pneg %p46
      %p53 = scmp.eq.s32.totalorder %s14, 7
      %p54 = por %p52, %p53
      %p55 = scmp.ne.s32.totalorder %s47, %s50
      %p56 = scmp.eq.s32.totalorder %s14, 0
      %p57 = por %p55, %p56
      %p58 = scmp.ne.s32.totalorder %s47, %s50
      %p59 = scmp.eq.s32.totalorder %s19, 7
      %p60 = por %p58, %p59
      %p61 = scmp.ne.s32.totalorder %s50, %s51
      %p62 = scmp.eq.s32.totalorder %s19, 0
      %p63 = por %p61, %p62
      %p64 = scmp.ne.s32.totalorder %s50, %s51
      %p65 = scmp.eq.s32.totalorder %s20, 7
      %p66 = por %p64, %p65
      %p68 = scmp.ne.s32.totalorder %s51, %s67
      %p69 = scmp.eq.s32.totalorder %s20, 0
      %p70 = por %p68, %p69
      %s71 = ssub.s32 %s21, %s40
      %s72 = ssub.s32 %s22, %s36
      %s73 = sor.u32 %s71, %s72
      %p74 = scmp.eq.s32.totalorder %s73, 0
      %s76 = sadd.s32 %s75, 1
      %s77 = scalar_select %p74, %s75, %s76
      %p80 = pneg %p74
      %p81 = scmp.eq.s32.totalorder %s14, 7
      %p82 = por %p80, %p81
      %p83 = scmp.ne.s32.totalorder %s75, %s78
      %p84 = scmp.eq.s32.totalorder %s14, 0
      %p85 = por %p83, %p84
      %p86 = scmp.ne.s32.totalorder %s75, %s78
      %p87 = scmp.eq.s32.totalorder %s19, 7
      %p88 = por %p86, %p87
      %p89 = scmp.ne.s32.totalorder %s78, %s79
      %p90 = scmp.eq.s32.totalorder %s19, 0
      %p91 = por %p89, %p90
      %p92 = scmp.ne.s32.totalorder %s78, %s79
      %p93 = scmp.eq.s32.totalorder %s20, 7
      %p94 = por %p92, %p93
      %p96 = scmp.ne.s32.totalorder %s79, %s95
      %p97 = scmp.eq.s32.totalorder %s20, 0
      %p98 = por %p96, %p97
      %s99 = ssub.s32 %s21, %s40
      %s100 = ssub.s32 %s22, %s36
      %s101 = sor.u32 %s99, %s100
      %s102 = ssub.s32 %s23, %s32
      %s103 = sor.u32 %s101, %s102
      %p104 = scmp.eq.s32.totalorder %s103, 0
      %s106 = sadd.s32 %s105, 1
      %s107 = scalar_select %p104, %s105, %s106
      %p110 = pneg %p104
      %p111 = scmp.eq.s32.totalorder %s14, 7
      %p112 = por %p110, %p111
      %p113 = scmp.ne.s32.totalorder %s105, %s108
      %p114 = scmp.eq.s32.totalorder %s14, 0
      %p115 = por %p113, %p114
      %p116 = scmp.ne.s32.totalorder %s105, %s108
      %p117 = scmp.eq.s32.totalorder %s19, 7
      %p118 = por %p116, %p117
      %p119 = scmp.ne.s32.totalorder %s108, %s109
      %p120 = scmp.eq.s32.totalorder %s19, 0
      %p121 = por %p119, %p120
      %p122 = scmp.ne.s32.totalorder %s108, %s109
      %p123 = scmp.eq.s32.totalorder %s20, 7
      %p124 = por %p122, %p123
      %p126 = scmp.ne.s32.totalorder %s109, %s125
      %p127 = scmp.eq.s32.totalorder %s20, 0
      %p128 = por %p126, %p127
      %p129 = scmp.le.s32.totalorder 1, %s14
      %p130 = scmp.lt.s32.totalorder %s14, 9
      %p131 = pnand %p129, %p130
      %p132 = pneg %p131
      // Predicated region
      $region9: #{tpu_custom_call.1} parent=5 // pred_check
        _
      $region10: #{tpu_custom_call.1} parent=5 // pred_check_branch
        %134 = sbr.rel (%p131) target = $region12
      $region11: #{tpu_custom_call.1} parent=5 // pred_region
        %s135 = ssub.s32 %s14, 1
      $region12: #{tpu_custom_call.1} parent=5 // pred_fallthru
        _
      %p136 = scmp.lt.s32.totalorder %s14, 8
      // Predicated region
      $region13: #{tpu_custom_call.1} parent=5 // pred_check
        %p137 = pneg %p136
      $region14: #{tpu_custom_call.1} parent=5 // pred_check_branch
        %139 = sbr.rel (%p137) target = $region16
      $region15: #{tpu_custom_call.1} parent=5 // pred_region
        // Predicated region
        $region17: #{tpu_custom_call.1} parent=15 // pred_check
          %p140 = pneg %p57
        $region18: #{tpu_custom_call.1} parent=15 // pred_check_branch
          %142 = sbr.rel (%p140) target = $region20
        $region19: #{tpu_custom_call.1} parent=15 // pred_region
          %s143 = sand.u32 %s47, 1
          %s144 = scalar_lea.sflag [#allocation3], %s143
          %s145 = sand.u32 %s47, 1
          %s146 = smul.addr %s145, 16
          %s147 = scalar_lea.vmem [#allocation2], %s146
          %s148 = smul.u32 2, %s22
          %s150 = ssub.s32 256, 256
          %151 = vsyncadd %s144, %s150
          %s152 = smul.addr %s23, 2
          %s153 = sadd.s32 %s148, %s152
          %s154 = smul.addr %s21, 8
          %s155 = sadd.s32 %s153, %s154
          %s156 = smul.addr %s155, 128
          %s157 = scalar_lea.hbm %s0, %s156
          %s158 = sshll.u32 %s147, 4
          %s159 = int_to_ptr.vmem [resolvable:$true] %s158
          %164 = dma.hbm_to_vmem [thread:$0]  %s157, 256, %s159, %s144, 128, 128, 8
        $region20: #{tpu_custom_call.1} parent=15 // pred_fallthru
          _
        // Predicated region
        $region21: #{tpu_custom_call.1} parent=15 // pred_check
          %p165 = pneg %p85
        $region22: #{tpu_custom_call.1} parent=15 // pred_check_branch
          %167 = sbr.rel (%p165) target = $region24
        $region23: #{tpu_custom_call.1} parent=15 // pred_region
          %s168 = sand.u32 %s75, 1
          %s169 = scalar_lea.sflag [#allocation5], %s168
          %s170 = sand.u32 %s75, 1
          %s171 = smul.addr %s170, 16
          %s172 = scalar_lea.vmem [#allocation4], %s171
          %s173 = smul.u32 2, %s22
          %s175 = ssub.s32 256, 256
          %176 = vsyncadd %s169, %s175
          %s177 = smul.addr %s21, 2
          %s178 = sadd.s32 %s173, %s177
          %s179 = smul.addr %s178, 128
          %s180 = scalar_lea.hbm %s1, %s179
          %s181 = sshll.u32 %s172, 4
          %s182 = int_to_ptr.vmem [resolvable:$true] %s181
          %187 = dma.hbm_to_vmem [thread:$0]  %s180, 256, %s182, %s169, 128, 128, 8
        $region24: #{tpu_custom_call.1} parent=15 // pred_fallthru
          _
      $region16: #{tpu_custom_call.1} parent=5 // pred_fallthru
        _
      %p188 = scmp.le.s32.totalorder 1, %s14
      %p189 = scmp.lt.s32.totalorder %s14, 9
      %p190 = pnand %p188, %p189
      %p191 = pneg %p190
      // Predicated region
      $region25: #{tpu_custom_call.1} parent=5 // pred_check
        _
      $region26: #{tpu_custom_call.1} parent=5 // pred_check_branch
        %193 = sbr.rel (%p190) target = $region28
      $region27: #{tpu_custom_call.1} parent=5 // pred_region
        %s194 = ssub.s32 %s14, 1
        %s195 = sand.u32 %s50, 1
        %s196 = scalar_lea.sflag [#allocation3], %s195
        %s197 = sand.u32 %s50, 1
        %s198 = smul.addr %s197, 16
        %s199 = scalar_lea.vmem [#allocation2], %s198
        // Predicated region
        $region29: #{tpu_custom_call.1} parent=27 // pred_check
          %p200 = pneg %p63
        $region30: #{tpu_custom_call.1} parent=27 // pred_check_branch
          %202 = sbr.rel (%p200) target = $region32
        $region31: #{tpu_custom_call.1} parent=27 // pred_region
          %203 = dma.done %s196, 256
        $region32: #{tpu_custom_call.1} parent=27 // pred_fallthru
          _
        %s204 = sand.u32 %s78, 1
        %s205 = scalar_lea.sflag [#allocation5], %s204
        %s206 = sand.u32 %s78, 1
        %s207 = smul.addr %s206, 16
        %s208 = scalar_lea.vmem [#allocation4], %s207
        // Predicated region
        $region33: #{tpu_custom_call.1} parent=27 // pred_check
          %p209 = pneg %p91
        $region34: #{tpu_custom_call.1} parent=27 // pred_check_branch
          %211 = sbr.rel (%p209) target = $region36
        $region35: #{tpu_custom_call.1} parent=27 // pred_region
          %212 = dma.done %s205, 256
        $region36: #{tpu_custom_call.1} parent=27 // pred_fallthru
          _
        %s213 = sand.u32 %s50, 1
        %s214 = scalar_lea.sflag [#allocation3], %s213
        %s215 = sand.u32 %s50, 1
        %s216 = smul.addr %s215, 16
        %s217 = scalar_lea.vmem [#allocation2], %s216
        %p218 = pneg %p63
        %p219 = pneg %p60
        %s220 = sand.u32 %s78, 1
        %s221 = scalar_lea.sflag [#allocation5], %s220
        %s222 = sand.u32 %s78, 1
        %s223 = smul.addr %s222, 16
        %s224 = scalar_lea.vmem [#allocation4], %s223
        %p225 = pneg %p91
        %p226 = pneg %p88
        %p227 = pneg %p121
        %p228 = pneg %p118
        %p229 = scmp.lt.s32.totalorder %s24, 1
        %s230 = scalar_select %p229, %s24, 1
        %p231 = scmp.lt.s32.totalorder %s25, 0
        %s232 = scalar_select %p231, %s25, 0
        %p233 = scmp.lt.s32.totalorder %s26, 3
        %s234 = scalar_select %p233, %s26, 3
        %s235 = smul.addr %s232, 4
        %s236 = sadd.s32 %s234, %s235
        %s237 = smul.addr %s230, 4
        %s238 = sadd.s32 %s236, %s237
        %s239 = smul.addr %s238, 4
        %s240 = scalar_lea.vmem %s2, %s239
        %s241 = smul.u32 2, %s25
        %s242 = smul.u32 2, %s25
        %p243 = scmp.lt.s32.totalorder %s24, 1
        %s244 = scalar_select %p243, %s24, 1
        %p245 = scmp.lt.s32.totalorder %s25, 0
        %s246 = scalar_select %p245, %s25, 0
        %p247 = scmp.lt.s32.totalorder %s26, 3
        %s248 = scalar_select %p247, %s26, 3
        %s249 = smul.addr %s246, 4
        %s250 = sadd.s32 %s248, %s249
        %s251 = smul.addr %s244, 4
        %s252 = sadd.s32 %s250, %s251
        %s253 = smul.addr %s252, 4
        %s254 = scalar_lea.vmem %s2, %s253
        %v255 = vld [vmem:[%s199] sm:$0xff]
        %v256 = vld [vmem:[%s199 + $0x8] sm:$0xff]
        %v257 = vld [vmem:[%s208] sm:$0xff]
        %v258 = vld [vmem:[%s208 + $0x8] sm:$0xff]
        %v259 = vstv %s26
        %vm260 = vcmp.eq.s32.totalorder %v257, %v259
        %vm261 = vcmp.eq.s32.totalorder %v258, %v259
        %v262 = vsel %vm260, 1, 0
        %v263 = vsel %vm261, 1, 0
        %v264 = vcvt.s32.f32 %v262
        %v265 = vcvt.s32.f32 %v263
        %v266 = vmul.f32 %v255, %v264
        %v267 = vmul.f32 %v256, %v265
        %vm268 = vcmask 130048
        %v269 = vsel %vm268, %v266, 0.0
        %v270 = vsel %vm268, %v267, 0.0
        %v271 = vadd.f32 %v269, %v270
        %v272 = vrot.slane %v271, 4
        %v273 = vadd.f32 %v271, %v272
        %v274 = vrot.slane %v273, 2
        %v275 = vadd.f32 %v273, %v274
        %v276 = vrot.slane %v275, 1
        %v277 = vadd.f32 %v275, %v276
        %v278 = vsel %vm268, %v264, 0.0
        %v279 = vsel %vm268, %v265, 0.0
        %v280 = vadd.f32 %v278, %v279
        %v281 = vrot.slane %v280, 4
        %v282 = vadd.f32 %v280, %v281
        %v283 = vrot.slane %v282, 2
        %v284 = vadd.f32 %v282, %v283
        %v285 = vrot.slane %v284, 1
        %v286 = vadd.f32 %v284, %v285
        %v287 = vmul.f32 %v255, %v255
        %v288 = vmul.f32 %v256, %v256
        %v289 = vsel %vm268, %v287, 0.0
        %v290 = vsel %vm268, %v288, 0.0
        %v291 = vadd.f32 %v289, %v290
        %v292 = vrot.slane %v291, 4
        %v293 = vadd.f32 %v291, %v292
        %v294 = vrot.slane %v293, 2
        %v295 = vadd.f32 %v293, %v294
        %v296 = vrot.slane %v295, 1
        %v297 = vadd.f32 %v295, %v296
        %vm298 = vcmask 1040384
        %v299 = vsel %vm298, %v277, %v286
        %vm300 = vcmask 1041408
        %v301 = vsel %vm300, %v299, %v297
        %vm302 = vcmask 124928
        %303 = vst.msk [vmem:[%s254] sm:$0x7] %vm302, %v301
        %p304 = scmp.lt.s32.totalorder %s24, 1
        %s305 = scalar_select %p304, %s24, 1
        %p306 = scmp.lt.s32.totalorder %s25, 0
        %s307 = scalar_select %p306, %s25, 0
        %p308 = scmp.lt.s32.totalorder %s26, 3
        %s309 = scalar_select %p308, %s26, 3
        %s310 = smul.addr %s307, 4
        %s311 = sadd.s32 %s309, %s310
        %s312 = smul.addr %s305, 4
        %s313 = sadd.s32 %s311, %s312
        %s314 = smul.addr %s313, 4
        %s315 = scalar_lea.vmem %s2, %s314
        // Predicated region
        $region37: #{tpu_custom_call.1} parent=27 // pred_check
          %p316 = pneg %p118
        $region38: #{tpu_custom_call.1} parent=27 // pred_check_branch
          %318 = sbr.rel (%p316) target = $region40
        $region39: #{tpu_custom_call.1} parent=27 // pred_region
          _
        $region40: #{tpu_custom_call.1} parent=27 // pred_fallthru
          _
      $region28: #{tpu_custom_call.1} parent=5 // pred_fallthru
        _
      %p319 = scmp.le.s32.totalorder 2, %s14
      // Predicated region
      $region41: #{tpu_custom_call.1} parent=5 // pred_check
        %p320 = pneg %p319
      $region42: #{tpu_custom_call.1} parent=5 // pred_check_branch
        %322 = sbr.rel (%p320) target = $region44
      $region43: #{tpu_custom_call.1} parent=5 // pred_region
        %s323 = ssub.s32 %s14, 2
        // Predicated region
        $region45: #{tpu_custom_call.1} parent=43 // pred_check
          %p324 = pneg %p124
        $region46: #{tpu_custom_call.1} parent=43 // pred_check_branch
          %326 = sbr.rel (%p324) target = $region48
        $region47: #{tpu_custom_call.1} parent=43 // pred_region
          %p327 = scmp.lt.s32.totalorder %s27, 1
          %s328 = scalar_select %p327, %s27, 1
          %p329 = scmp.lt.s32.totalorder %s28, 0
          %s330 = scalar_select %p329, %s28, 0
          %p331 = scmp.lt.s32.totalorder %s29, 3
          %s332 = scalar_select %p331, %s29, 3
          %s333 = smul.addr %s330, 4
          %s334 = sadd.s32 %s332, %s333
          %s335 = smul.addr %s328, 4
          %s336 = sadd.s32 %s334, %s335
          %s337 = smul.addr %s336, 4
          %s338 = scalar_lea.vmem %s2, %s337
        $region48: #{tpu_custom_call.1} parent=43 // pred_fallthru
          _
      $region44: #{tpu_custom_call.1} parent=5 // pred_fallthru
        _
    $region6: #{tpu_custom_call.1} parent=1 // loop_footer
      %s18 = sadd.s32 1, %s14
    $region7: #{tpu_custom_call.1} parent=1 // loop_footer_branch
      %13 = sbr.rel target = $region3
    $region8: #{tpu_custom_call.1} parent=1 // loop_exit
      _
    %339 = vsyncpa [#allocation3], 1
    %s340 = scalar_lea.sflag [#allocation3], 1
    %341 = vsyncpa %s340, 1
    %342 = vsyncpa [#allocation5], 1
    %s343 = scalar_lea.sflag [#allocation5], 1
    %344 = vsyncpa %s343, 1

</llo_original>
